<compile_context>
chip_gen: v5e
topology: v5e:2x2
jax: 0.10.0
libtpu: 0.0.40
codegen_flags: <defaults>
</compile_context>

<pallas_src>
import math

import numpy as np
import jax
import jax.numpy as jnp
from jax.experimental import pallas as pl
from jax.experimental.pallas import tpu as pltpu


_TARGET_BLOCK_BYTES = 4 * 1024 * 1024    # per-buffer tile budget (v6e/v7x sweet spot)
_VMEM_LIMIT_BYTES = 32 * 1024 * 1024     # explicit scoped-VMEM limit (safe on v5e..v7x)
_SMALL_INPUT_BYTES = 1 * 1024 * 1024     # below this, plain-JAX fused add wins
_MIN_SPLIT_BYTES = 1 * 1024 * 1024       # above this, ensure >=2 parallel tiles (v7x)


def create_positional_encoding(d_model: int, max_len: int) -> jnp.ndarray:
    """Deterministic sinusoidal table, identical to the PyTorch module's buffer."""
    position = np.arange(max_len)[:, np.newaxis].astype(np.float64)
    div_term = np.exp(np.arange(0, d_model, 2).astype(np.float64)
                      * -(math.log(10000.0) / d_model))
    pos_encodings = np.zeros((max_len, d_model), dtype=np.float64)
    pos_encodings[:, 0::2] = np.sin(position * div_term)
    pos_encodings[:, 1::2] = np.cos(position * div_term)
    return jnp.asarray(pos_encodings, dtype=jnp.float32)


def _add_pe_kernel(x_ref, pe_ref, o_ref):
    # x_ref / o_ref: (tB, tL) lane-dense tiles; pe_ref: (1, tL), broadcast over
    # the sublane (batch) axis.  Pure VPU add, no in-kernel casts/broadcasts.
    o_ref[...] = x_ref[...] + pe_ref[...]


def _divisors(n: int):
    """All positive divisors of n (O(sqrt(n)) trace-time work)."""
    small, large = [], []
    d = 1
    while d * d <= n:
        if n % d == 0:
            small.append(d)
            if d != n // d:
                large.append(n // d)
        d += 1
    return small + large[::-1]


def _min_sublane(dtype) -> int:
    """Native sublane packing: 8 rows for 32-bit, 16 for bf16, 32 for int8/fp8."""
    return max(8, 32 // jnp.dtype(dtype).itemsize)


def _choose_tiles(B: int, L: int, dtype,
                  target_block_bytes: int = _TARGET_BLOCK_BYTES):
    """Pick an evenly-dividing, (8,128)-legal (tB, tL) block.

    tB is a multiple of the dtype's native sublane packing (or the full B) and
    tL is a multiple of 128 (or the full L).  Each buffer <= target_block_bytes
    so double-buffered x-in / out plus the resident PE row fit in scoped VMEM
    on every TPU generation.  Mid-size single-block inputs are still split so
    both v7x TensorCores get work.
    """
    itemsize = jnp.dtype(dtype).itemsize
    sub = _min_sublane(dtype)

    def nbytes(tb, tl):
        return tb * tl * itemsize

    total = nbytes(B, L)
    if total <= target_block_bytes:
        tB, tL = B, L
        if total > _MIN_SPLIT_BYTES:
            # v7x has 2 TensorCores: give each at least one "parallel" tile.
            if L % 256 == 0:
                tL = L // 2
            elif B % (2 * sub) == 0:
                tB = B // 2
        return tB, tL

    tB, tL = B, L
    # Shrink the batch (sublane) tile first: largest sub-multiple dividing B.
    if B % sub == 0:
        fitting = [sub * d for d in _divisors(B // sub)
                   if nbytes(sub * d, tL) <= target_block_bytes]
        tB = max(fitting) if fitting else sub

    # Then shrink the lane tile: largest 128-multiple dividing L.
    if nbytes(tB, tL) > target_block_bytes and L % 128 == 0:
        fitting = [128 * d for d in _divisors(L // 128)
                   if nbytes(tB, 128 * d) <= target_block_bytes]
        tL = max(fitting) if fitting else 128

    # If neither axis is splittable the wrapper has already padded L to a
    # multiple of 128, so this "one full block" fallback only triggers for
    # shapes that fit VMEM anyway -- correct, just untiled.
    return tB, tL


def positional_encoding_forward(x: jnp.ndarray, pe_table: jnp.ndarray,
                                *, small_input_fast_path: bool = True) -> jnp.ndarray:
    """x: (B, S, D); pe_table: (max_len, D). Returns x + pe_table[:S] (broadcast on B)."""
    B, S, D = x.shape
    if S > pe_table.shape[0]:
        raise ValueError("Sequence length exceeds maximum length.")

    dtype = x.dtype
    itemsize = jnp.dtype(dtype).itemsize
    L = S * D
    total_bytes = B * L * itemsize

    # Cast the PE slice once in the wrapper (no per-tile VPU cast in the kernel).
    pe_slice = pe_table[:S, :].astype(dtype)

    # Tiny inputs: pallas_call dispatch + ~0.35 us/step overhead dominates; let
    # XLA fuse the broadcast add instead.
    if small_input_fast_path and total_bytes <= _SMALL_INPUT_BYTES:
        return x + pe_slice[None, :, :]

    # Lane-dense flat layout (free layout plumbing: row-major reshape).
    x2d = x.reshape(B, L)
    pe2d = pe_slice.reshape(1, L)

    # Guard: if the lane axis must be tiled but is not 128-aligned, pad it to a
    # multiple of 128 (slice back after) so the (8,128) rule stays satisfiable
    # and the fallback can never emit a VMEM-blowing single block on v7x.
    L_orig = L
    sub = _min_sublane(dtype)
    batch_shrink_suffices = (B % sub == 0) and (sub * L * itemsize <= _TARGET_BLOCK_BYTES)
    if total_bytes > _TARGET_BLOCK_BYTES and L % 128 != 0 and not batch_shrink_suffices:
        L = pl.cdiv(L_orig, 128) * 128
        pad = L - L_orig
        x2d = jnp.pad(x2d, ((0, 0), (0, pad)))
        pe2d = jnp.pad(pe2d, ((0, 0), (0, pad)))

    tB, tL = _choose_tiles(B, L, dtype)
    # Batch is the INNER (fastest-varying) grid axis: the PE block index only
    # depends on the outer lane axis, so the PE tile stays VMEM-resident across
    # all batch tiles instead of being re-fetched from HBM.
    grid = (L // tL, B // tB)

    cost = pl.CostEstimate(
        flops=B * L_orig,
        transcendentals=0,
        bytes_accessed=2 * B * L_orig * itemsize + L_orig * itemsize,
    )

    out2d = pl.pallas_call(
        _add_pe_kernel,
        out_shape=jax.ShapeDtypeStruct((B, L), dtype),
        grid=grid,
        in_specs=[
            pl.BlockSpec((tB, tL), lambda j, i: (i, j)),   # x tile
            pl.BlockSpec((1, tL), lambda j, i: (0, j)),    # PE row, constant over i
        ],
        out_specs=pl.BlockSpec((tB, tL), lambda j, i: (i, j)),
        compiler_params=pltpu.CompilerParams(
            dimension_semantics=("parallel", "parallel"),
            vmem_limit_bytes=_VMEM_LIMIT_BYTES,
        ),
        cost_estimate=cost,
    )(x2d, pe2d)

    if L != L_orig:
        out2d = out2d[:, :L_orig]
    return out2d.reshape(B, S, D)


if __name__ == "__main__":
    d_model = 32
    max_len = 300
    batch = 2
    seq_len = 8

    pe_table = create_positional_encoding(d_model, max_len)

    key = jax.random.PRNGKey(0)
    x = jax.random.normal(key, (batch, seq_len, d_model), dtype=jnp.float32)

    # Exercise the Pallas kernel path even at this small demo shape.
    out = positional_encoding_forward(x, pe_table, small_input_fast_path=False)
    out = jax.block_until_ready(out)

    # Also exercise the default (small-input XLA fast path) for parity.
    out_fast = jax.block_until_ready(positional_encoding_forward(x, pe_table))

    # correctness check against plain-JAX reference
    ref = x + pe_table[:seq_len, :][None, :, :]
    np.testing.assert_allclose(np.asarray(out), np.asarray(ref), rtol=1e-6, atol=1e-6)
    np.testing.assert_allclose(np.asarray(out_fast), np.asarray(ref), rtol=1e-6, atol=1e-6)

    print("KERNEL_OK")
</pallas_src>

<mosaic_0001>
module attributes {stable_mosaic.version = 11 : i64} {
  func.func @_add_pe_kernel(%arg0: i32, %arg1: i32, %arg2: memref<2x256xf32, #tpu.memory_space<vmem>>, %arg3: memref<1x256xf32, #tpu.memory_space<vmem>>, %arg4: memref<2x256xf32, #tpu.memory_space<vmem>>) attributes {dimension_semantics = [#tpu.dimension_semantics<parallel>, #tpu.dimension_semantics<parallel>], iteration_bounds = array<i64: 1, 1>, scalar_prefetch = 0 : i64, scratch_operands = 0 : i64, tpu.core_type = #tpu.core_type<tc>, window_params = [{transform_indices = @transform_0, window_bounds = array<i64: 2, 256>}, {transform_indices = @transform_1, window_bounds = array<i64: 1, 256>}, {transform_indices = @transform_2, window_bounds = array<i64: 2, 256>}]} {
    %c0 = arith.constant 0 : index
    %c0_0 = arith.constant 0 : index
    %0 = vector.load %arg2[%c0, %c0_0] : memref<2x256xf32, #tpu.memory_space<vmem>>, vector<2x256xf32>
    %c0_1 = arith.constant 0 : index
    %c0_2 = arith.constant 0 : index
    %1 = vector.load %arg3[%c0_1, %c0_2] : memref<1x256xf32, #tpu.memory_space<vmem>>, vector<1x256xf32>
    %2 = vector.broadcast %1 : vector<1x256xf32> to vector<2x256xf32>
    %3 = arith.addf %0, %2 : vector<2x256xf32>
    %c0_3 = arith.constant 0 : index
    %c0_4 = arith.constant 0 : index
    %4 = vector.load %arg4[%c0_3, %c0_4] : memref<2x256xf32, #tpu.memory_space<vmem>>, vector<2x256xf32>
    tpu.vector_store %arg4[%c0_3, %c0_4], %3 {strides = array<i32>} : memref<2x256xf32, #tpu.memory_space<vmem>>, vector<2x256xf32>,
    return
  }
  func.func @transform_0(%arg0: i32, %arg1: i32) -> (i32, i32) {
    %c0_i32 = arith.constant 0 : i32
    return %arg1, %arg0 : i32, i32
  }
  func.func @transform_1(%arg0: i32, %arg1: i32) -> (i32, i32) {
    %c0_i32 = arith.constant 0 : i32
    %c0_i32_0 = arith.constant 0 : i32
    return %c0_i32, %arg0 : i32, i32
  }
  func.func @transform_2(%arg0: i32, %arg1: i32) -> (i32, i32) {
    %c0_i32 = arith.constant 0 : i32
    return %arg1, %arg0 : i32, i32
  }
}

</mosaic_0001>

<llo_original>
// kernel: tpu_custom_call.1
$region0: #{tpu_custom_call.1}
  #allocation0 [shape = 'u32[]', space=smem, size = 0x4, offset = 0x4, fixed_abs, tag = 'smem constant byte address 0x4 - core index']
  #allocation1 [shape = 'u32[72,128]{1,0:T(1,128)}', space=vmem, size = 0x9000, scoped, tag = 'internal scratch']
  %s0 = inlined_call_operand.hbm [shape: f32[2,256], index: 0, kind: input, shape index: {}]
  %s1 = inlined_call_operand.hbm [shape: f32[1,256], index: 1, kind: input, shape index: {}]
  %s2 = inlined_call_operand.hbm [shape: f32[2,256], index: 2, kind: output, shape index: {}]
  %s3 = sld [smem:[#allocation0]]
  $region26: #{tpu_custom_call.1} parent=0
    _
  %s5 = ssub.s32 1, %s3
  %s6 = scalar_select 0, %s5, %s3
  $region1: #{tpu_custom_call.1} parent=0
    #allocation2 [shape = 'u8[2048]{0}', space=vmem, size = 0x800, scoped, tag = 'input window, operand 0, single buffered']
    #allocation3 [shape = 's32[1]{0}', space=sflag, size = 0x4, scoped, tag = 'scoped memory for tpu_custom_call.1']
    #allocation4 [shape = 's32[1]{0}', space=sflag, size = 0x4, scoped, tag = 'scoped memory for tpu_custom_call.1']
    #allocation5 [shape = 'u8[1024]{0}', space=vmem, size = 0x400, scoped, tag = 'input window, operand 1, single buffered']
    #allocation6 [shape = 's32[1]{0}', space=sflag, size = 0x4, scoped, tag = 'scoped memory for tpu_custom_call.1']
    #allocation7 [shape = 'u8[2048]{0}', space=vmem, size = 0x800, scoped, tag = 'output window, operand 0, single buffered']
    %7 = vsyncpa [#allocation3], 0
    %8 = vsyncpa [#allocation6], 0
    %9 = vsyncpa [#allocation4], 0
    // Predicated region
    $region2: #{tpu_custom_call.1} parent=1 // pred_check
      _
    $region3: #{tpu_custom_call.1} parent=1 // pred_check_branch
      %11 = sbr.rel (0) target = $region5
    $region4: #{tpu_custom_call.1} parent=1 // pred_region
      %13 = vsyncadd [#allocation3], 0
      %s15 = sshll.u32 %s0, 4
      %s16 = int_to_ptr.hbm [resolvable:$true] %s15
      %s17 = sshll.u32 [#allocation2], 4
      %s18 = int_to_ptr.vmem [resolvable:$true] %s17
      %20 = dma.hbm_to_vmem [thread:$0]  %s16, 64, %s18, [#allocation3]
    $region5: #{tpu_custom_call.1} parent=1 // pred_fallthru
      _
    // Predicated region
    $region6: #{tpu_custom_call.1} parent=1 // pred_check
      _
    $region7: #{tpu_custom_call.1} parent=1 // pred_check_branch
      %22 = sbr.rel (0) target = $region9
    $region8: #{tpu_custom_call.1} parent=1 // pred_region
      %24 = vsyncadd [#allocation6], 0
      %s26 = sshll.u32 %s1, 4
      %s27 = int_to_ptr.hbm [resolvable:$true] %s26
      %s28 = sshll.u32 [#allocation5], 4
      %s29 = int_to_ptr.vmem [resolvable:$true] %s28
      %31 = dma.hbm_to_vmem [thread:$0]  %s27, 32, %s29, [#allocation6]
    $region9: #{tpu_custom_call.1} parent=1 // pred_fallthru
      _
    // Predicated region
    $region10: #{tpu_custom_call.1} parent=1 // pred_check
      _
    $region11: #{tpu_custom_call.1} parent=1 // pred_check_branch
      %33 = sbr.rel (0) target = $region13
    $region12: #{tpu_custom_call.1} parent=1 // pred_region
      %35 = dma.done [#allocation3], 64
    $region13: #{tpu_custom_call.1} parent=1 // pred_fallthru
      _
    // Predicated region
    $region14: #{tpu_custom_call.1} parent=1 // pred_check
      _
    $region15: #{tpu_custom_call.1} parent=1 // pred_check_branch
      %37 = sbr.rel (0) target = $region17
    $region16: #{tpu_custom_call.1} parent=1 // pred_region
      %39 = dma.done [#allocation6], 32
    $region17: #{tpu_custom_call.1} parent=1 // pred_fallthru
      _
    %v40 = vld [vmem:[#allocation2] sm:$0xf]
    %v41 = vld [vmem:[#allocation5] sm:$0x3]
    %v43 = vperm.slane %v41, 0
    %v44 = vperm.slane %v41, 1
    %v45 = vrot.slane %v44, 6
    %vm46 = vcmask 1041408
    %v47 = vsel %vm46, %v43, %v45
    %v49 = vadd.f32 %v40, %v47
    %50 = vst [vmem:[#allocation7] sm:$0xf] %v49
    // Predicated region
    $region18: #{tpu_custom_call.1} parent=1 // pred_check
      _
    $region19: #{tpu_custom_call.1} parent=1 // pred_check_branch
      %52 = sbr.rel (0) target = $region21
    $region20: #{tpu_custom_call.1} parent=1 // pred_region
      %54 = vsyncadd [#allocation4], 0
      %s56 = sshll.u32 [#allocation7], 4
      %s57 = int_to_ptr.vmem [resolvable:$true] %s56
      %s58 = sshll.u32 %s2, 4
      %s59 = int_to_ptr.hbm [resolvable:$true] %s58
      %61 = dma.vmem_to_hbm [thread:$0]  %s57, 64, %s59, [#allocation4]
    $region21: #{tpu_custom_call.1} parent=1 // pred_fallthru
      _
    // Predicated region
    $region22: #{tpu_custom_call.1} parent=1 // pred_check
      _
    $region23: #{tpu_custom_call.1} parent=1 // pred_check_branch
      %63 = sbr.rel (0) target = $region25
    $region24: #{tpu_custom_call.1} parent=1 // pred_region
      %65 = dma.done [#allocation4], 64
    $region25: #{tpu_custom_call.1} parent=1 // pred_fallthru
      _
    %66 = vsyncpa [#allocation3], 1
    %67 = vsyncpa [#allocation6], 1
    %68 = vsyncpa [#allocation4], 1

</llo_original>
